<compile_context>
chip_gen: v6e
topology: v6e:2x2x1
jax: 0.10.0
libtpu: 0.0.40
codegen_flags: <defaults>
</compile_context>

<pallas_src>
import jax
import jax.numpy as jnp
from jax.experimental import pallas as pl
from jax.experimental.pallas import tpu as pltpu

IN_FEATURES = 120
OUT_FEATURES = 84
N_PAD_OUT = 128  # lane-dense matmul width (84 -> 128)


def _round_up(x, m):
    return ((x + m - 1) // m) * m


def linear_kernel(x_ref, w_ref, b_ref, o_ref):
    # x_ref: (TM, 120)   w_ref: (120, 128) canonical (K, N) layout
    # b_ref: (1, 84)     o_ref: (TM, 84)
    # MXU matmul, f32 accumulate at 128 lanes; slice the accumulator to the
    # true 84 outputs, add bias on the VPU, store 84-wide.
    acc = jnp.dot(x_ref[...], w_ref[...], preferred_element_type=jnp.float32)
    o_ref[...] = (acc[:, :OUT_FEATURES] + b_ref[...]).astype(o_ref.dtype)


def linear_pallas(x, weight, bias, *, tm=2048):
    """x: (N, in), weight: (out, in) [PyTorch layout], bias: (out,)."""
    n, in_f = x.shape
    out_f = weight.shape[0]

    # Row tile: multiple of 8 (f32 sublane), clamped to the batch size.
    tm = min(tm, _round_up(n, 8))
    grid = (pl.cdiv(n, tm),)

    # One-time weight transpose + N-padding to canonical (K, N_PAD) layout.
    # (~40 KB; constant-folded when weights are static under jit.)
    w_t = jnp.pad(weight.T, ((0, 0), (0, N_PAD_OUT - out_f)))
    b_2d = bias.reshape(1, out_f)

    cost = pl.CostEstimate(
        flops=2 * n * in_f * out_f,
        transcendentals=0,
        bytes_accessed=n * (in_f + out_f) * x.dtype.itemsize
        + w_t.size * w_t.dtype.itemsize
        + b_2d.size * b_2d.dtype.itemsize,
    )

    out = pl.pallas_call(
        linear_kernel,
        out_shape=jax.ShapeDtypeStruct((n, out_f), x.dtype),
        grid=grid,
        in_specs=[
            # x: tiled over the batch, streamed / double-buffered per step.
            pl.BlockSpec((tm, in_f), lambda i: (i, 0)),
            # weight / bias: same block every step -> stay VMEM-resident.
            pl.BlockSpec((in_f, N_PAD_OUT), lambda i: (0, 0)),
            pl.BlockSpec((1, out_f), lambda i: (0, 0)),
        ],
        out_specs=pl.BlockSpec((tm, out_f), lambda i: (i, 0)),
        compiler_params=pltpu.CompilerParams(
            dimension_semantics=("parallel",),
        ),
        cost_estimate=cost,
    )(x, w_t, b_2d)

    return out


if __name__ == "__main__":
    key = jax.random.PRNGKey(0)

    batch = 8
    x = jax.random.normal(key, (batch, IN_FEATURES), dtype=jnp.float32)

    # Deterministic parameter init, matching Model(input_to_constant=True):
    #   fc.weight.data.fill_(0.1); fc.bias.data.fill_(1)
    weight = jnp.full((OUT_FEATURES, IN_FEATURES), 0.1, dtype=jnp.float32)
    bias = jnp.full((OUT_FEATURES,), 1.0, dtype=jnp.float32)

    out = linear_pallas(x, weight, bias)
    out = jax.block_until_ready(out)

    # Correctness check against plain-JAX reference (f32 path, tight tolerance).
    ref = x @ weight.T + bias
    assert out.shape == (batch, OUT_FEATURES)
    assert jnp.allclose(out, ref, atol=1e-5, rtol=1e-5)

    print("KERNEL_OK")
</pallas_src>

<mosaic_0001>
module attributes {stable_mosaic.version = 11 : i64} {
  func.func @linear_kernel(%arg0: i32, %arg1: memref<8x120xf32, #tpu.memory_space<vmem>>, %arg2: memref<120x128xf32, #tpu.memory_space<vmem>>, %arg3: memref<1x84xf32, #tpu.memory_space<vmem>>, %arg4: memref<8x84xf32, #tpu.memory_space<vmem>>) attributes {dimension_semantics = [#tpu.dimension_semantics<parallel>], iteration_bounds = array<i64: 1>, scalar_prefetch = 0 : i64, scratch_operands = 0 : i64, tpu.core_type = #tpu.core_type<tc>, window_params = [{transform_indices = @transform_0, window_bounds = array<i64: 8, 120>}, {pipeline_mode = #tpu.pipeline_mode<synchronous>, transform_indices = @transform_1, window_bounds = array<i64: 120, 128>}, {pipeline_mode = #tpu.pipeline_mode<synchronous>, transform_indices = @transform_2, window_bounds = array<i64: 1, 84>}, {transform_indices = @transform_3, window_bounds = array<i64: 8, 84>}]} {
    %c0 = arith.constant 0 : index
    %c0_0 = arith.constant 0 : index
    %0 = vector.load %arg1[%c0, %c0_0] : memref<8x120xf32, #tpu.memory_space<vmem>>, vector<8x120xf32>
    %c0_1 = arith.constant 0 : index
    %c0_2 = arith.constant 0 : index
    %1 = vector.load %arg2[%c0_1, %c0_2] : memref<120x128xf32, #tpu.memory_space<vmem>>, vector<120x128xf32>
    %cst = arith.constant dense<0.000000e+00> : vector<8x128xf32>
    %2 = tpu.matmul %0, %1, %cst {dimension_numbers = #tpu.dot_dimension_numbers<[1], [0], [0], [1], [0, 0, 1, 1], [], []>} : vector<8x120xf32>, vector<120x128xf32>, vector<8x128xf32> -> vector<8x128xf32>
    %3 = vector.extract_strided_slice %2 {offsets = [0, 0], sizes = [8, 84], strides = [1, 1]} : vector<8x128xf32> to vector<8x84xf32>
    %c0_3 = arith.constant 0 : index
    %c0_4 = arith.constant 0 : index
    %4 = vector.load %arg3[%c0_3, %c0_4] : memref<1x84xf32, #tpu.memory_space<vmem>>, vector<1x84xf32>
    %5 = vector.broadcast %4 : vector<1x84xf32> to vector<8x84xf32>
    %6 = arith.addf %3, %5 : vector<8x84xf32>
    %c0_5 = arith.constant 0 : index
    %c0_6 = arith.constant 0 : index
    %7 = vector.load %arg4[%c0_5, %c0_6] : memref<8x84xf32, #tpu.memory_space<vmem>>, vector<8x84xf32>
    tpu.vector_store %arg4[%c0_5, %c0_6], %6 {strides = array<i32>} : memref<8x84xf32, #tpu.memory_space<vmem>>, vector<8x84xf32>,
    return
  }
  func.func @transform_0(%arg0: i32) -> (i32, i32) {
    %c0_i32 = arith.constant 0 : i32
    %c0_i32_0 = arith.constant 0 : i32
    return %arg0, %c0_i32 : i32, i32
  }
  func.func @transform_1(%arg0: i32) -> (i32, i32) {
    %c0_i32 = arith.constant 0 : i32
    %c0_i32_0 = arith.constant 0 : i32
    %c0_i32_1 = arith.constant 0 : i32
    return %c0_i32, %c0_i32_0 : i32, i32
  }
  func.func @transform_2(%arg0: i32) -> (i32, i32) {
    %c0_i32 = arith.constant 0 : i32
    %c0_i32_0 = arith.constant 0 : i32
    %c0_i32_1 = arith.constant 0 : i32
    return %c0_i32, %c0_i32_0 : i32, i32
  }
  func.func @transform_3(%arg0: i32) -> (i32, i32) {
    %c0_i32 = arith.constant 0 : i32
    %c0_i32_0 = arith.constant 0 : i32
    return %arg0, %c0_i32 : i32, i32
  }
}

</mosaic_0001>

<llo_original>
// kernel: tpu_custom_call.1
$region0: #{tpu_custom_call.1}
  #allocation0 [shape = 'u32[]', space=smem, size = 0x4, offset = 0x4, fixed_abs, tag = 'smem constant byte address 0x4 - core index']
  #allocation1 [shape = 'u32[144,128]{1,0:T(1,128)}', space=vmem, size = 0x12000, scoped, tag = 'internal scratch']
  %s0 = inlined_call_operand.hbm [shape: f32[8,120], index: 0, kind: input, shape index: {}]
  %s1 = inlined_call_operand.hbm [shape: f32[120,128], index: 1, kind: input, shape index: {}]
  %s2 = inlined_call_operand.vmem [shape: f32[1,84], index: 2, kind: input, shape index: {}]
  %s3 = inlined_call_operand.hbm [shape: f32[8,84], index: 3, kind: output, shape index: {}]
  %s4 = sld [smem:[#allocation0]]
  $region30: #{tpu_custom_call.1} parent=0
    _
  %s6 = ssub.s32 1, %s4
  %s7 = scalar_select 0, %s6, %s4
  $region1: #{tpu_custom_call.1} parent=0
    #allocation2 [shape = 'u8[4096]{0}', space=vmem, size = 0x1000, scoped, tag = 'input window, operand 0, single buffered']
    #allocation3 [shape = 's32[1]{0}', space=sflag, size = 0x4, scoped, tag = 'scoped memory for tpu_custom_call.1']
    #allocation4 [shape = 's32[1]{0}', space=sflag, size = 0x4, scoped, tag = 'scoped memory for tpu_custom_call.1']
    #allocation5 [shape = 'u8[61440]{0}', space=vmem, size = 0xf000, scoped, tag = 'input window, operand 1, single buffered']
    #allocation6 [shape = 's32[1]{0}', space=sflag, size = 0x4, scoped, tag = 'scoped memory for tpu_custom_call.1']
    #allocation7 [shape = 'u8[4096]{0}', space=vmem, size = 0x1000, scoped, tag = 'output window, operand 0, single buffered']
    %8 = vsyncpa [#allocation3], 0
    %9 = vsyncpa [#allocation6], 0
    %10 = vsyncpa [#allocation4], 0
    // Predicated region
    $region2: #{tpu_custom_call.1} parent=1 // pred_check
      _
    $region3: #{tpu_custom_call.1} parent=1 // pred_check_branch
      %12 = sbr.rel (0) target = $region5
    $region4: #{tpu_custom_call.1} parent=1 // pred_region
      %s14 = ssub.s32 128, 128
      %15 = vsyncadd [#allocation3], %s14
      %s17 = sshll.u32 [#allocation2], 4
      %s18 = int_to_ptr.vmem [resolvable:$true] %s17
      %20 = dma.hbm_to_vmem [thread:$0]  %s0, 128, %s18, [#allocation3]
    $region5: #{tpu_custom_call.1} parent=1 // pred_fallthru
      _
    // Predicated region
    $region6: #{tpu_custom_call.1} parent=1 // pred_check
      _
    $region7: #{tpu_custom_call.1} parent=1 // pred_check_branch
      %22 = sbr.rel (0) target = $region9
    $region8: #{tpu_custom_call.1} parent=1 // pred_region
      %s24 = ssub.s32 1920, 1920
      %25 = vsyncadd [#allocation6], %s24
      %s26 = sshll.u32 [#allocation5], 4
      %s27 = int_to_ptr.vmem [resolvable:$true] %s26
      %32 = dma.hbm_to_vmem [thread:$0]  %s1, 1920, %s27, [#allocation6], 128, 128, 8
    $region9: #{tpu_custom_call.1} parent=1 // pred_fallthru
      _
    // Predicated region
    $region10: #{tpu_custom_call.1} parent=1 // pred_check
      _
    $region11: #{tpu_custom_call.1} parent=1 // pred_check_branch
      %34 = sbr.rel (0) target = $region13
    $region12: #{tpu_custom_call.1} parent=1 // pred_region
      _
    $region13: #{tpu_custom_call.1} parent=1 // pred_fallthru
      _
    // Predicated region
    $region14: #{tpu_custom_call.1} parent=1 // pred_check
      _
    $region15: #{tpu_custom_call.1} parent=1 // pred_check_branch
      %36 = sbr.rel (0) target = $region17
    $region16: #{tpu_custom_call.1} parent=1 // pred_region
      %37 = dma.done [#allocation3], 128
    $region17: #{tpu_custom_call.1} parent=1 // pred_fallthru
      _
    // Predicated region
    $region18: #{tpu_custom_call.1} parent=1 // pred_check
      _
    $region19: #{tpu_custom_call.1} parent=1 // pred_check_branch
      %39 = sbr.rel (0) target = $region21
    $region20: #{tpu_custom_call.1} parent=1 // pred_region
      %40 = dma.done [#allocation6], 1920
    $region21: #{tpu_custom_call.1} parent=1 // pred_fallthru
      _
    %v41 = vld [vmem:[#allocation2] sm:$0xff]
    %v42 = vld [vmem:[#allocation5] sm:$0xff]
    %v43 = vld [vmem:[#allocation5 + $0x8] sm:$0xff]
    %v44 = vld [vmem:[#allocation5 + $0x10] sm:$0xff]
    %v45 = vld [vmem:[#allocation5 + $0x18] sm:$0xff]
    %v46 = vld [vmem:[#allocation5 + $0x20] sm:$0xff]
    %v47 = vld [vmem:[#allocation5 + $0x28] sm:$0xff]
    %v48 = vld [vmem:[#allocation5 + $0x30] sm:$0xff]
    %v49 = vld [vmem:[#allocation5 + $0x38] sm:$0xff]
    %v50 = vld [vmem:[#allocation5 + $0x40] sm:$0xff]
    %v51 = vld [vmem:[#allocation5 + $0x48] sm:$0xff]
    %v52 = vld [vmem:[#allocation5 + $0x50] sm:$0xff]
    %v53 = vld [vmem:[#allocation5 + $0x58] sm:$0xff]
    %v54 = vld [vmem:[#allocation5 + $0x60] sm:$0xff]
    %v55 = vld [vmem:[#allocation5 + $0x68] sm:$0xff]
    %v56 = vld [vmem:[#allocation5 + $0x70] sm:$0xff]
    %vm57 = vcmask 982016
    %v59 = vsel %vm57, %v41, 0
    %61 = vmatprep.subr.mxu0 0.0
    %62 = vmatpush1.msra.mxu0 0.0
    %63 = vmatprep.subr.mxu0 0.0
    %64 = vmatpush1.msra.mxu0 %v56
    %65 = vmatprep.subr.mxu0 0.0
    %66 = vmatpush1.msra.mxu0 %v55
    %67 = vmatprep.subr.mxu0 0.0
    %68 = vmatpush1.msra.mxu0 %v54
    %69 = vmatprep.subr.mxu0 0.0
    %70 = vmatpush1.msra.mxu0 %v53
    %71 = vmatprep.subr.mxu0 0.0
    %72 = vmatpush1.msra.mxu0 %v52
    %73 = vmatprep.subr.mxu0 0.0
    %74 = vmatpush1.msra.mxu0 %v51
    %75 = vmatprep.subr.mxu0 0.0
    %76 = vmatpush1.msra.mxu0 %v50
    %77 = vmatprep.subr.mxu0 0.0
    %78 = vmatpush1.msra.mxu0 %v49
    %79 = vmatprep.subr.mxu0 0.0
    %80 = vmatpush1.msra.mxu0 %v48
    %81 = vmatprep.subr.mxu0 0.0
    %82 = vmatpush1.msra.mxu0 %v47
    %83 = vmatprep.subr.mxu0 0.0
    %84 = vmatpush1.msra.mxu0 %v46
    %85 = vmatprep.subr.mxu0 0.0
    %86 = vmatpush1.msra.mxu0 %v45
    %87 = vmatprep.subr.mxu0 0.0
    %88 = vmatpush1.msra.mxu0 %v44
    %89 = vmatprep.subr.mxu0 0.0
    %90 = vmatpush1.msra.mxu0 %v43
    %91 = vmatprep.subr.mxu0 0.0
    %92 = vmatpush1.msra.mxu0 %v42
    %93 = vmatprep.subr.mxu0 0.0
    %94 = vmatpush2.msra.mxu0 0.0
    %95 = vmatprep.subr.mxu0 0.0
    %96 = vmatpush2.msra.mxu0 0.0
    %97 = vmatprep.subr.mxu0 0.0
    %98 = vmatpush2.msra.mxu0 0.0
    %99 = vmatprep.subr.mxu0 0.0
    %100 = vmatpush2.msra.mxu0 0.0
    %101 = vmatprep.subr.mxu0 0.0
    %102 = vmatpush2.msra.mxu0 0.0
    %103 = vmatprep.subr.mxu0 0.0
    %104 = vmatpush2.msra.mxu0 0.0
    %105 = vmatprep.subr.mxu0 0.0
    %106 = vmatpush2.msra.mxu0 0.0
    %107 = vmatprep.subr.mxu0 0.0
    %108 = vmatpush2.msra.mxu0 0.0
    %109 = vmatprep.subr.mxu0 0.0
    %110 = vmatpush2.msra.mxu0 0.0
    %111 = vmatprep.subr.mxu0 0.0
    %112 = vmatpush2.msra.mxu0 0.0
    %113 = vmatprep.subr.mxu0 0.0
    %114 = vmatpush2.msra.mxu0 0.0
    %115 = vmatprep.subr.mxu0 0.0
    %116 = vmatpush2.msra.mxu0 0.0
    %117 = vmatprep.subr.mxu0 0.0
    %118 = vmatpush2.msra.mxu0 0.0
    %119 = vmatprep.subr.mxu0 0.0
    %120 = vmatpush2.msra.mxu0 0.0
    %121 = vmatprep.subr.mxu0 0.0
    %122 = vmatpush2.msra.mxu0 0.0
    %123 = vmatprep.subr.mxu0 0.0
    %124 = vmatpush2.msra.mxu0 0.0
    %125 = vmatprep.mubr.f32.mxu0 0.0
    %126 = vmatmul.mubr.f32.gmra.mxu0 %v59
    %v127 = vpop.f32.mrf.mxu0
    %v128 = vadd.f32 0.0, %v127
    %v129 = vpop.f32.mrf.mxu0
    %130 = vdwg.mxu0
    %v131 = vld [vmem:[%s2] sm:$0x1]
    %v133 = vlaneseq
    %v134 = vshrl.u32 %v133, 7
    %v135 = vsub.s32 0, %v134
    %v136 = vrot.slane %v131, %v135
    %v138 = vadd.f32 %v128, %v136
    %vm139 = vcmask 687104
    %140 = vst.msk [vmem:[#allocation7] sm:$0xff] %vm139, %v138
    // Predicated region
    $region22: #{tpu_custom_call.1} parent=1 // pred_check
      _
    $region23: #{tpu_custom_call.1} parent=1 // pred_check_branch
      %142 = sbr.rel (0) target = $region25
    $region24: #{tpu_custom_call.1} parent=1 // pred_region
      %s144 = ssub.s32 128, 128
      %145 = vsyncadd [#allocation4], %s144
      %s147 = sshll.u32 [#allocation7], 4
      %s148 = int_to_ptr.vmem [resolvable:$true] %s147
      %150 = dma.vmem_to_hbm [thread:$0]  %s148, 128, %s3, [#allocation4]
    $region25: #{tpu_custom_call.1} parent=1 // pred_fallthru
      _
    // Predicated region
    $region26: #{tpu_custom_call.1} parent=1 // pred_check
      _
    $region27: #{tpu_custom_call.1} parent=1 // pred_check_branch
      %152 = sbr.rel (0) target = $region29
    $region28: #{tpu_custom_call.1} parent=1 // pred_region
      %153 = dma.done [#allocation4], 128
    $region29: #{tpu_custom_call.1} parent=1 // pred_fallthru
      _
    %154 = vsyncpa [#allocation3], 1
    %155 = vsyncpa [#allocation6], 1
    %156 = vsyncpa [#allocation4], 1

</llo_original>
